<compile_context>
chip_gen: v7x
topology: tpu7x:2x2x1
jax: 0.10.0
libtpu: 0.0.40
codegen_flags: <defaults>
</compile_context>

<pallas_src>
import functools

import jax
import jax.numpy as jnp
from jax.experimental import pallas as pl
from jax.experimental.pallas import tpu as pltpu


def _round_up(n, m):
    return ((n + m - 1) // m) * m


def _residual_add_linear_kernel(x_ref, w_ref, b_ref, o_ref, *, compute_dtype):
    # x_ref: (TM, Hp) native dtype   w_ref: (Hp, Hp) compute dtype
    # b_ref: (1, Hp)  f32            o_ref: (TM, Hp) out dtype
    x = x_ref[...]
    # fn(x) = x @ W + b  -- MXU matmul with f32 accumulation; x is cast to the
    # compute dtype only here (a VMEM-local cast, no extra HBM pass).
    y = jnp.dot(x.astype(compute_dtype), w_ref[...],
                preferred_element_type=jnp.float32)
    # ResidualAdd: fn(x) + x, done in f32 from the original-precision x,
    # single cast on store (avoids double rounding when out_dtype is bf16).
    o_ref[...] = (y + b_ref[...] + x.astype(jnp.float32)).astype(o_ref.dtype)


def residual_add_linear(x, w, b, *, tm=1024, compute_dtype=jnp.bfloat16,
                        out_dtype=None):
    """ResidualAdd(Linear): returns (x @ w + b) + x.

    x: (B, S, H), w: (H, H), b: (H,).  x enters the kernel in its native
    dtype; the matmul runs in `compute_dtype` (bf16 by default) with f32
    accumulation, the residual add runs in f32, and the output is stored in
    `out_dtype` (defaults to x.dtype; pass bfloat16 to halve write traffic
    when the downstream consumer accepts it).
    """
    B, S, H = x.shape
    T = B * S
    out_dtype = x.dtype if out_dtype is None else out_dtype

    # Lane-dense hidden dim, rounded to full 256-wide MXU tiles (no-op for
    # typical ViT hidden sizes).  Token tile: multiple of the sublane tile for
    # x's native dtype; token dim is left unpadded (ragged last grid block).
    Hp = _round_up(H, 256)
    x_it = jnp.dtype(x.dtype).itemsize
    sub = max(8, 32 // x_it)
    TM = min(_round_up(tm, sub), _round_up(T, sub))
    grid = (pl.cdiv(T, TM),)

    # TODO(synk): for very large hidden dims (Hp*Hp*2B beyond ~48 MiB, i.e.
    # H > ~5k) W no longer fits resident in v7x VMEM and would need an N-tiled
    # grid axis (and pipeline_mode=pl.Buffered(1) on W); not needed for ViT.

    x2 = x.reshape(T, H)
    w_c = w.astype(compute_dtype)
    b2 = b.reshape(1, H).astype(jnp.float32)
    if Hp != H:
        # Only the contraction dim must be zero-padded; token dim stays ragged.
        x2 = jnp.pad(x2, ((0, 0), (0, Hp - H)))
        w_c = jnp.pad(w_c, ((0, Hp - H), (0, Hp - H)))
        b2 = jnp.pad(b2, ((0, 0), (0, Hp - H)))

    w_it = jnp.dtype(compute_dtype).itemsize
    o_it = jnp.dtype(out_dtype).itemsize

    # Double-buffered x/out tiles + W (the pipeline double-buffers it even
    # though its index_map is constant) + bias.  ~30% headroom, clamped to
    # v7x's 64 MiB physical VMEM per TensorCore.
    vmem_needed = (2 * TM * Hp * (x_it + o_it)
                   + 2 * Hp * Hp * w_it
                   + 2 * Hp * 4)
    vmem_limit = int(min(max(int(1.3 * vmem_needed), 32 << 20), 64 << 20))

    cost = pl.CostEstimate(
        flops=2 * T * Hp * Hp,
        transcendentals=0,
        bytes_accessed=(T * H * x_it          # x read (native dtype)
                        + T * H * o_it        # out write
                        + Hp * Hp * w_it      # W read
                        + Hp * 4),            # b read
    )

    kernel = functools.partial(_residual_add_linear_kernel,
                               compute_dtype=compute_dtype)

    out = pl.pallas_call(
        kernel,
        out_shape=jax.ShapeDtypeStruct((T, Hp), out_dtype),
        grid_spec=pltpu.PrefetchScalarGridSpec(
            num_scalar_prefetch=0,
            grid=grid,
            in_specs=[
                pl.BlockSpec((TM, Hp), lambda i: (i, 0)),   # x tile (pipelined)
                pl.BlockSpec((Hp, Hp), lambda i: (0, 0)),   # W (VMEM-resident)
                pl.BlockSpec((1, Hp), lambda i: (0, 0)),    # b (VMEM-resident)
            ],
            out_specs=pl.BlockSpec((TM, Hp), lambda i: (i, 0)),
        ),
        compiler_params=pltpu.CompilerParams(
            dimension_semantics=("parallel",),
            vmem_limit_bytes=vmem_limit,
        ),
        cost_estimate=cost,
    )(x2, w_c, b2)

    if Hp != H:
        out = out[:, :H]
    return out.reshape(B, S, H)


if __name__ == "__main__":
    # Small ViT-ish shapes: batch=2, seq=8, hidden=32.
    # TODO(synk): ResidualAdd wraps an arbitrary `fn`; only a Linear `fn` is
    # fused here (arbitrary sub-modules cannot be generically fused).
    B, S, H = 2, 8, 32
    key = jax.random.PRNGKey(0)
    kx, kw, kb = jax.random.split(key, 3)

    x = jax.random.normal(kx, (B, S, H), dtype=jnp.float32)
    w = jax.random.normal(kw, (H, H), dtype=jnp.float32) * (1.0 / jnp.sqrt(H))
    b = jax.random.normal(kb, (H,), dtype=jnp.float32) * 0.01

    # --- f32 compute path: exact check vs plain-JAX reference -------------
    out_f32 = jax.block_until_ready(
        residual_add_linear(x, w, b, compute_dtype=jnp.float32))
    ref_f32 = (jnp.einsum("bsh,hk->bsk", x, w) + b) + x
    assert out_f32.shape == (B, S, H)
    assert jnp.allclose(out_f32, ref_f32, atol=1e-5, rtol=1e-5), \
        "f32 path mismatch vs reference"

    # --- default bf16 compute path: residual from original-precision x ----
    out_bf = jax.block_until_ready(residual_add_linear(x, w, b))
    ref_bf = (jnp.einsum("bsh,hk->bsk",
                         x.astype(jnp.bfloat16), w.astype(jnp.bfloat16),
                         preferred_element_type=jnp.float32)
              + b) + x
    assert out_bf.shape == (B, S, H)
    assert out_bf.dtype == x.dtype
    assert jnp.allclose(out_bf, ref_bf, atol=2e-2, rtol=2e-2), \
        "bf16 path mismatch vs reference"

    print("KERNEL_OK")
</pallas_src>

<mosaic_0001>
module attributes {stable_mosaic.version = 11 : i64} {
  func.func @_residual_add_linear_kernel(%arg0: i32, %arg1: memref<16x256xf32, #tpu.memory_space<vmem>>, %arg2: memref<256x256xf32, #tpu.memory_space<vmem>>, %arg3: memref<1x256xf32, #tpu.memory_space<vmem>>, %arg4: memref<16x256xf32, #tpu.memory_space<vmem>>) attributes {dimension_semantics = [#tpu.dimension_semantics<parallel>], iteration_bounds = array<i64: 1>, scalar_prefetch = 0 : i64, scratch_operands = 0 : i64, tpu.core_type = #tpu.core_type<tc>, window_params = [{transform_indices = @transform_0, window_bounds = array<i64: 16, 256>}, {pipeline_mode = #tpu.pipeline_mode<synchronous>, transform_indices = @transform_1, window_bounds = array<i64: 256, 256>}, {pipeline_mode = #tpu.pipeline_mode<synchronous>, transform_indices = @transform_2, window_bounds = array<i64: 1, 256>}, {transform_indices = @transform_3, window_bounds = array<i64: 16, 256>}]} {
    %c0 = arith.constant 0 : index
    %c0_0 = arith.constant 0 : index
    %0 = vector.load %arg1[%c0, %c0_0] : memref<16x256xf32, #tpu.memory_space<vmem>>, vector<16x256xf32>
    %c0_1 = arith.constant 0 : index
    %c0_2 = arith.constant 0 : index
    %1 = vector.load %arg2[%c0_1, %c0_2] : memref<256x256xf32, #tpu.memory_space<vmem>>, vector<256x256xf32>
    %cst = arith.constant dense<0.000000e+00> : vector<16x256xf32>
    %2 = tpu.matmul %0, %1, %cst {dimension_numbers = #tpu.dot_dimension_numbers<[1], [0], [0], [1], [0, 0, 1, 1], [], []>} : vector<16x256xf32>, vector<256x256xf32>, vector<16x256xf32> -> vector<16x256xf32>
    %c0_3 = arith.constant 0 : index
    %c0_4 = arith.constant 0 : index
    %3 = vector.load %arg3[%c0_3, %c0_4] : memref<1x256xf32, #tpu.memory_space<vmem>>, vector<1x256xf32>
    %4 = vector.broadcast %3 : vector<1x256xf32> to vector<16x256xf32>
    %5 = arith.addf %2, %4 : vector<16x256xf32>
    %6 = arith.addf %5, %0 : vector<16x256xf32>
    %c0_5 = arith.constant 0 : index
    %c0_6 = arith.constant 0 : index
    %7 = vector.load %arg4[%c0_5, %c0_6] : memref<16x256xf32, #tpu.memory_space<vmem>>, vector<16x256xf32>
    tpu.vector_store %arg4[%c0_5, %c0_6], %6 {strides = array<i32>} : memref<16x256xf32, #tpu.memory_space<vmem>>, vector<16x256xf32>,
    return
  }
  func.func @transform_0(%arg0: i32) -> (i32, i32) {
    %c0_i32 = arith.constant 0 : i32
    %c0_i32_0 = arith.constant 0 : i32
    return %arg0, %c0_i32 : i32, i32
  }
  func.func @transform_1(%arg0: i32) -> (i32, i32) {
    %c0_i32 = arith.constant 0 : i32
    %c0_i32_0 = arith.constant 0 : i32
    %c0_i32_1 = arith.constant 0 : i32
    return %c0_i32, %c0_i32_0 : i32, i32
  }
  func.func @transform_2(%arg0: i32) -> (i32, i32) {
    %c0_i32 = arith.constant 0 : i32
    %c0_i32_0 = arith.constant 0 : i32
    %c0_i32_1 = arith.constant 0 : i32
    return %c0_i32, %c0_i32_0 : i32, i32
  }
  func.func @transform_3(%arg0: i32) -> (i32, i32) {
    %c0_i32 = arith.constant 0 : i32
    %c0_i32_0 = arith.constant 0 : i32
    return %arg0, %c0_i32 : i32, i32
  }
}

</mosaic_0001>

<llo_original>
// kernel: tpu_custom_call.1
$region0: #{tpu_custom_call.1}
  #allocation0 [shape = 'u32[]', space=smem, size = 0x4, offset = 0x4, fixed_abs, tag = 'smem constant byte address 0x4 - core index']
  #allocation1 [shape = 'u32[144,128]{1,0:T(1,128)}', space=vmem, size = 0x12000, scoped, tag = 'internal scratch']
  %s0 = inlined_call_operand.hbm [shape: f32[16,256], index: 0, kind: input, shape index: {}]
  %s1 = inlined_call_operand.hbm [shape: f32[256,256], index: 1, kind: input, shape index: {}]
  %s2 = inlined_call_operand.vmem [shape: f32[1,256], index: 2, kind: input, shape index: {}]
  %s3 = inlined_call_operand.hbm [shape: f32[16,256], index: 3, kind: output, shape index: {}]
  %s4 = sld [smem:[#allocation0]]
  $region30: #{tpu_custom_call.1} parent=0
    _
  %s6 = ssub.s32 1, %s4
  %s7 = scalar_select 0, %s6, %s4
  $region1: #{tpu_custom_call.1} parent=0
    #allocation2 [shape = 'u8[16384]{0}', space=vmem, size = 0x4000, scoped, tag = 'input window, operand 0, single buffered']
    #allocation3 [shape = 's32[1]{0}', space=sflag, size = 0x4, scoped, tag = 'scoped memory for tpu_custom_call.1']
    #allocation4 [shape = 's32[1]{0}', space=sflag, size = 0x4, scoped, tag = 'scoped memory for tpu_custom_call.1']
    #allocation5 [shape = 'u8[262144]{0}', space=vmem, size = 0x40000, scoped, tag = 'input window, operand 1, single buffered']
    #allocation6 [shape = 's32[1]{0}', space=sflag, size = 0x4, scoped, tag = 'scoped memory for tpu_custom_call.1']
    #allocation7 [shape = 'u8[16384]{0}', space=vmem, size = 0x4000, scoped, tag = 'output window, operand 0, single buffered']
    %8 = vsyncpa [#allocation3], 0
    %9 = vsyncpa [#allocation6], 0
    %10 = vsyncpa [#allocation4], 0
    // Predicated region
    $region2: #{tpu_custom_call.1} parent=1 // pred_check
      _
    $region3: #{tpu_custom_call.1} parent=1 // pred_check_branch
      %12 = sbr.rel (0) target = $region5
    $region4: #{tpu_custom_call.1} parent=1 // pred_region
      %s14 = ssub.s32 512, 512
      %15 = vsyncadd [#allocation3], %s14
      %s16 = sshll.u32 [#allocation2], 4
      %s17 = int_to_ptr.vmem [resolvable:$true] %s16
      %22 = dma.hbm_to_vmem [thread:$0]  %s0, 512, %s17, [#allocation3], 256, 256, 16
    $region5: #{tpu_custom_call.1} parent=1 // pred_fallthru
      _
    // Predicated region
    $region6: #{tpu_custom_call.1} parent=1 // pred_check
      _
    $region7: #{tpu_custom_call.1} parent=1 // pred_check_branch
      %24 = sbr.rel (0) target = $region9
    $region8: #{tpu_custom_call.1} parent=1 // pred_region
      %s26 = ssub.s32 8192, 8192
      %27 = vsyncadd [#allocation6], %s26
      %s28 = sshll.u32 [#allocation5], 4
      %s29 = int_to_ptr.vmem [resolvable:$true] %s28
      %34 = dma.hbm_to_vmem [thread:$0]  %s1, 8192, %s29, [#allocation6], 256, 256, 16
    $region9: #{tpu_custom_call.1} parent=1 // pred_fallthru
      _
    // Predicated region
    $region10: #{tpu_custom_call.1} parent=1 // pred_check
      _
    $region11: #{tpu_custom_call.1} parent=1 // pred_check_branch
      %36 = sbr.rel (0) target = $region13
    $region12: #{tpu_custom_call.1} parent=1 // pred_region
      _
    $region13: #{tpu_custom_call.1} parent=1 // pred_fallthru
      _
    // Predicated region
    $region14: #{tpu_custom_call.1} parent=1 // pred_check
      _
    $region15: #{tpu_custom_call.1} parent=1 // pred_check_branch
      %38 = sbr.rel (0) target = $region17
    $region16: #{tpu_custom_call.1} parent=1 // pred_region
      %39 = dma.done [#allocation3], 512
    $region17: #{tpu_custom_call.1} parent=1 // pred_fallthru
      _
    // Predicated region
    $region18: #{tpu_custom_call.1} parent=1 // pred_check
      _
    $region19: #{tpu_custom_call.1} parent=1 // pred_check_branch
      %41 = sbr.rel (0) target = $region21
    $region20: #{tpu_custom_call.1} parent=1 // pred_region
      %42 = dma.done [#allocation6], 8192
    $region21: #{tpu_custom_call.1} parent=1 // pred_fallthru
      _
    %v43 = vld [vmem:[#allocation2] sm:$0xff]
    %v44 = vld [vmem:[#allocation2 + $0x8] sm:$0xff]
    %v45 = vld [vmem:[#allocation2 + $0x10] sm:$0xff]
    %v46 = vld [vmem:[#allocation2 + $0x18] sm:$0xff]
    %v47 = vld [vmem:[#allocation5] sm:$0xff]
    %v48 = vld [vmem:[#allocation5 + $0x8] sm:$0xff]
    %v49 = vld [vmem:[#allocation5 + $0x10] sm:$0xff]
    %v50 = vld [vmem:[#allocation5 + $0x18] sm:$0xff]
    %v51 = vld [vmem:[#allocation5 + $0x20] sm:$0xff]
    %v52 = vld [vmem:[#allocation5 + $0x28] sm:$0xff]
    %v53 = vld [vmem:[#allocation5 + $0x30] sm:$0xff]
    %v54 = vld [vmem:[#allocation5 + $0x38] sm:$0xff]
    %v55 = vld [vmem:[#allocation5 + $0x40] sm:$0xff]
    %v56 = vld [vmem:[#allocation5 + $0x48] sm:$0xff]
    %v57 = vld [vmem:[#allocation5 + $0x50] sm:$0xff]
    %v58 = vld [vmem:[#allocation5 + $0x58] sm:$0xff]
    %v59 = vld [vmem:[#allocation5 + $0x60] sm:$0xff]
    %v60 = vld [vmem:[#allocation5 + $0x68] sm:$0xff]
    %v61 = vld [vmem:[#allocation5 + $0x70] sm:$0xff]
    %v62 = vld [vmem:[#allocation5 + $0x78] sm:$0xff]
    %v63 = vld [vmem:[#allocation5 + $0x80] sm:$0xff]
    %v64 = vld [vmem:[#allocation5 + $0x88] sm:$0xff]
    %v65 = vld [vmem:[#allocation5 + $0x90] sm:$0xff]
    %v66 = vld [vmem:[#allocation5 + $0x98] sm:$0xff]
    %v67 = vld [vmem:[#allocation5 + $0xa0] sm:$0xff]
    %v68 = vld [vmem:[#allocation5 + $0xa8] sm:$0xff]
    %v69 = vld [vmem:[#allocation5 + $0xb0] sm:$0xff]
    %v70 = vld [vmem:[#allocation5 + $0xb8] sm:$0xff]
    %v71 = vld [vmem:[#allocation5 + $0xc0] sm:$0xff]
    %v72 = vld [vmem:[#allocation5 + $0xc8] sm:$0xff]
    %v73 = vld [vmem:[#allocation5 + $0xd0] sm:$0xff]
    %v74 = vld [vmem:[#allocation5 + $0xd8] sm:$0xff]
    %v75 = vld [vmem:[#allocation5 + $0xe0] sm:$0xff]
    %v76 = vld [vmem:[#allocation5 + $0xe8] sm:$0xff]
    %v77 = vld [vmem:[#allocation5 + $0xf0] sm:$0xff]
    %v78 = vld [vmem:[#allocation5 + $0xf8] sm:$0xff]
    %v79 = vld [vmem:[#allocation5 + $0x100] sm:$0xff]
    %v80 = vld [vmem:[#allocation5 + $0x108] sm:$0xff]
    %v81 = vld [vmem:[#allocation5 + $0x110] sm:$0xff]
    %v82 = vld [vmem:[#allocation5 + $0x118] sm:$0xff]
    %v83 = vld [vmem:[#allocation5 + $0x120] sm:$0xff]
    %v84 = vld [vmem:[#allocation5 + $0x128] sm:$0xff]
    %v85 = vld [vmem:[#allocation5 + $0x130] sm:$0xff]
    %v86 = vld [vmem:[#allocation5 + $0x138] sm:$0xff]
    %v87 = vld [vmem:[#allocation5 + $0x140] sm:$0xff]
    %v88 = vld [vmem:[#allocation5 + $0x148] sm:$0xff]
    %v89 = vld [vmem:[#allocation5 + $0x150] sm:$0xff]
    %v90 = vld [vmem:[#allocation5 + $0x158] sm:$0xff]
    %v91 = vld [vmem:[#allocation5 + $0x160] sm:$0xff]
    %v92 = vld [vmem:[#allocation5 + $0x168] sm:$0xff]
    %v93 = vld [vmem:[#allocation5 + $0x170] sm:$0xff]
    %v94 = vld [vmem:[#allocation5 + $0x178] sm:$0xff]
    %v95 = vld [vmem:[#allocation5 + $0x180] sm:$0xff]
    %v96 = vld [vmem:[#allocation5 + $0x188] sm:$0xff]
    %v97 = vld [vmem:[#allocation5 + $0x190] sm:$0xff]
    %v98 = vld [vmem:[#allocation5 + $0x198] sm:$0xff]
    %v99 = vld [vmem:[#allocation5 + $0x1a0] sm:$0xff]
    %v100 = vld [vmem:[#allocation5 + $0x1a8] sm:$0xff]
    %v101 = vld [vmem:[#allocation5 + $0x1b0] sm:$0xff]
    %v102 = vld [vmem:[#allocation5 + $0x1b8] sm:$0xff]
    %v103 = vld [vmem:[#allocation5 + $0x1c0] sm:$0xff]
    %v104 = vld [vmem:[#allocation5 + $0x1c8] sm:$0xff]
    %v105 = vld [vmem:[#allocation5 + $0x1d0] sm:$0xff]
    %v106 = vld [vmem:[#allocation5 + $0x1d8] sm:$0xff]
    %v107 = vld [vmem:[#allocation5 + $0x1e0] sm:$0xff]
    %v108 = vld [vmem:[#allocation5 + $0x1e8] sm:$0xff]
    %v109 = vld [vmem:[#allocation5 + $0x1f0] sm:$0xff]
    %v110 = vld [vmem:[#allocation5 + $0x1f8] sm:$0xff]
    %v111 = vld [vmem:[%s2] sm:$0x3]
    %v113 = vlaneseq
    %v114 = vshrl.u32 %v113, 7
    %v115 = vsub.s32 0, %v114
    %v116 = vrot.slane %v111, %v115
    %v117 = vlaneseq
    %v118 = vshrl.u32 %v117, 7
    %v119 = vsub.s32 1, %v118
    %v120 = vrot.slane %v111, %v119
    %123 = vmatprep.subr.mxu0 %v48
    %124 = vmatpush1.msra.mxu0 %v47
    %125 = vmatprep.subr.mxu0 %v50
    %126 = vmatpush1.msra.mxu0 %v49
    %127 = vmatprep.subr.mxu0 %v52
    %128 = vmatpush1.msra.mxu0 %v51
    %129 = vmatprep.subr.mxu0 %v54
    %130 = vmatpush1.msra.mxu0 %v53
    %131 = vmatprep.subr.mxu0 %v56
    %132 = vmatpush1.msra.mxu0 %v55
    %133 = vmatprep.subr.mxu0 %v58
    %134 = vmatpush1.msra.mxu0 %v57
    %135 = vmatprep.subr.mxu0 %v60
    %136 = vmatpush1.msra.mxu0 %v59
    %137 = vmatprep.subr.mxu0 %v62
    %138 = vmatpush1.msra.mxu0 %v61
    %139 = vmatprep.subr.mxu0 %v64
    %140 = vmatpush1.msra.mxu0 %v63
    %141 = vmatprep.subr.mxu0 %v66
    %142 = vmatpush1.msra.mxu0 %v65
    %143 = vmatprep.subr.mxu0 %v68
    %144 = vmatpush1.msra.mxu0 %v67
    %145 = vmatprep.subr.mxu0 %v70
    %146 = vmatpush1.msra.mxu0 %v69
    %147 = vmatprep.subr.mxu0 %v72
    %148 = vmatpush1.msra.mxu0 %v71
    %149 = vmatprep.subr.mxu0 %v74
    %150 = vmatpush1.msra.mxu0 %v73
    %151 = vmatprep.subr.mxu0 %v76
    %152 = vmatpush1.msra.mxu0 %v75
    %153 = vmatprep.subr.mxu0 %v78
    %154 = vmatpush1.msra.mxu0 %v77
    %155 = vmatprep.subr.mxu0 %v80
    %156 = vmatpush1.msra.mxu0 %v79
    %157 = vmatprep.subr.mxu0 %v82
    %158 = vmatpush1.msra.mxu0 %v81
    %159 = vmatprep.subr.mxu0 %v84
    %160 = vmatpush1.msra.mxu0 %v83
    %161 = vmatprep.subr.mxu0 %v86
    %162 = vmatpush1.msra.mxu0 %v85
    %163 = vmatprep.subr.mxu0 %v88
    %164 = vmatpush1.msra.mxu0 %v87
    %165 = vmatprep.subr.mxu0 %v90
    %166 = vmatpush1.msra.mxu0 %v89
    %167 = vmatprep.subr.mxu0 %v92
    %168 = vmatpush1.msra.mxu0 %v91
    %169 = vmatprep.subr.mxu0 %v94
    %170 = vmatpush1.msra.mxu0 %v93
    %171 = vmatprep.subr.mxu0 %v96
    %172 = vmatpush1.msra.mxu0 %v95
    %173 = vmatprep.subr.mxu0 %v98
    %174 = vmatpush1.msra.mxu0 %v97
    %175 = vmatprep.subr.mxu0 %v100
    %176 = vmatpush1.msra.mxu0 %v99
    %177 = vmatprep.subr.mxu0 %v102
    %178 = vmatpush1.msra.mxu0 %v101
    %179 = vmatprep.subr.mxu0 %v104
    %180 = vmatpush1.msra.mxu0 %v103
    %181 = vmatprep.subr.mxu0 %v106
    %182 = vmatpush1.msra.mxu0 %v105
    %183 = vmatprep.subr.mxu0 %v108
    %184 = vmatpush1.msra.mxu0 %v107
    %185 = vmatprep.subr.mxu0 %v110
    %186 = vmatpush1.msra.mxu0 %v109
    %187 = vmatprep.mubr.f32.mxu0 %v44
    %188 = vmatmul.mubr.f32.gmra.mrb[0].mxu0 %v43
    %v189 = vpop.f32.mrb[0].mxu0
    %v190 = vadd.f32 %v116, %v189
    %v191 = vpop.f32.mrb[0].mxu0
    %v192 = vadd.f32 %v120, %v191
    %193 = vmatprep.mubr.f32.mxu0 %v46
    %194 = vmatmul.mubr.f32.gmra.mrb[0].mxu0 %v45
    %v195 = vpop.f32.mrb[0].mxu0
    %v196 = vadd.f32 %v116, %v195
    %v197 = vpop.f32.mrb[0].mxu0
    %v198 = vadd.f32 %v120, %v197
    %199 = vdwg.mxu0
    %v200 = vadd.f32 %v190, %v43
    %v201 = vadd.f32 %v192, %v44
    %v202 = vadd.f32 %v196, %v45
    %v203 = vadd.f32 %v198, %v46
    %204 = vst [vmem:[#allocation7] sm:$0xff] %v200
    %205 = vst [vmem:[#allocation7 + $0x8] sm:$0xff] %v201
    %206 = vst [vmem:[#allocation7 + $0x10] sm:$0xff] %v202
    %207 = vst [vmem:[#allocation7 + $0x18] sm:$0xff] %v203
    // Predicated region
    $region22: #{tpu_custom_call.1} parent=1 // pred_check
      _
    $region23: #{tpu_custom_call.1} parent=1 // pred_check_branch
      %209 = sbr.rel (0) target = $region25
    $region24: #{tpu_custom_call.1} parent=1 // pred_region
      %s211 = ssub.s32 512, 512
      %212 = vsyncadd [#allocation4], %s211
      %s213 = sshll.u32 [#allocation7], 4
      %s214 = int_to_ptr.vmem [resolvable:$true] %s213
      %219 = dma.vmem_to_hbm [thread:$0]  %s214, 512, %s3, [#allocation4], 256, 256, 16
    $region25: #{tpu_custom_call.1} parent=1 // pred_fallthru
      _
    // Predicated region
    $region26: #{tpu_custom_call.1} parent=1 // pred_check
      _
    $region27: #{tpu_custom_call.1} parent=1 // pred_check_branch
      %221 = sbr.rel (0) target = $region29
    $region28: #{tpu_custom_call.1} parent=1 // pred_region
      %222 = dma.done [#allocation4], 512
    $region29: #{tpu_custom_call.1} parent=1 // pred_fallthru
      _
    %223 = vsyncpa [#allocation3], 1
    %224 = vsyncpa [#allocation6], 1
    %225 = vsyncpa [#allocation4], 1

</llo_original>
